<compile_context>
chip_gen: v5e
topology: v5e:2x2
jax: 0.10.0
libtpu: 0.0.40
codegen_flags: <defaults>
</compile_context>

<pallas_src>
import functools

import jax
import jax.numpy as jnp
from jax import lax
from jax.experimental import pallas as pl
from jax.experimental.pallas import tpu as pltpu


def _round_up(n, m):
    return -(-n // m) * m


def _lstm_point_kernel(x_ref, p_ref, o_ref, *, H, D, T, B, G, LW, offs):
    """LSTM recurrence + output projection; single invocation, all VMEM.

    x_ref : (T*B, D)    time-major flattened input (B already 8-aligned)
    p_ref : (rows, LW)  packed parameter slab, 8-row-aligned sections:
              [0 : D]            W_ih^T   (D, 4H)  gate order [i,f,o,g];
                                           i/f/o columns pre-scaled by 0.5
              [off_hh : +H]      W_hh^T   (H, 4H)  same order / pre-scale
              [off_b]            b        (1, 4H)  = b_ih + b_hh, same
              [off_mul]          mul_vec  (1, 4H)  [.5,.5,.5, 1] per gate
              [off_add]          add_vec  (1, 4H)  [.5,.5,.5, 0] per gate
              [off_wout : +H]    W_out^T  (H, LW)  zero-padded past O
              [off_bout]         b_out    (1, LW)  zero-padded past O
    o_ref : (3, B, LW)  row 0 = out (lanes 0:O), row 1 = h_n, row 2 = c_n
    """
    off_hh, off_b, off_mul, off_add, off_wout, off_bout = offs

    w_ih = p_ref[0:D, :G]
    w_hh = p_ref[off_hh:off_hh + H, :G]            # loop-invariant, stays live
    b = p_ref[off_b:off_b + 1, :G]
    mul_v = p_ref[off_mul:off_mul + 1, :G]
    add_v = p_ref[off_add:off_add + 1, :G]
    w_out = p_ref[off_wout:off_wout + H, :]        # (H, LW) lane-dense
    b_out = p_ref[off_bout:off_bout + 1, :]        # (1, LW)

    # Hoisted input projection: one (T*B, D) @ (D, 4H) matmul + bias, done once,
    # off the serial recurrent critical path.
    x_proj = (jnp.dot(x_ref[...], w_ih, preferred_element_type=jnp.float32) + b)

    h = jnp.zeros((B, H), dtype=jnp.float32)
    c = jnp.zeros((B, H), dtype=jnp.float32)

    # Fully unrolled recurrence (T static & small).  Per step: one small
    # matmul, ONE tanh on the full 128-lane gates vreg (sigmoid in tanh form —
    # the 0.5 pre-scale is folded into the weights offline), one hoisted
    # affine, then the gate combine.
    for t in range(T):
        gates = (x_proj[t * B:(t + 1) * B, :]
                 + jnp.dot(h, w_hh, preferred_element_type=jnp.float32))
        acts = jnp.tanh(gates) * mul_v + add_v   # [sig(i)|sig(f)|sig(o)|tanh(g)]
        i_g = acts[:, 0:H]              # lane offset 0: free view
        f_g = acts[:, H:2 * H]          # the three realignments below are
        o_g = acts[:, 2 * H:3 * H]      # mutually independent XLU moves
        g_g = acts[:, 3 * H:4 * H]
        c = f_g * c + i_g * g_g
        h = o_g * jnp.tanh(c)

    # Epilogue: one lane-dense packed output (single write-back DMA).
    pad = jnp.zeros((B, LW - H), dtype=jnp.float32)
    o_ref[0] = jnp.dot(h, w_out, preferred_element_type=jnp.float32) + b_out
    o_ref[1] = jnp.concatenate([h, pad], axis=-1)
    o_ref[2] = jnp.concatenate([c, pad], axis=-1)


def point_rnn_forward(x, kparams, *, horizon, output_size):
    """Forward pass matching PointRNN.forward (LSTM mode, state=None).

    x       : (B, T, D) float32, batch-first like the PyTorch module.
    kparams : output of pack_params() (single lane-dense parameter slab).
    Returns (out, (h_n, c_n)):
      out : (B, horizon, output_size)
      h_n : (1, B, H)
      c_n : (1, B, H)
    """
    x = x.astype(jnp.float32)
    B, T, D = x.shape
    meta = kparams["meta"]
    H, G, LW, O = meta["H"], meta["G"], meta["LW"], meta["O"]
    assert D == meta["D"]
    assert O == horizon * output_size

    # Pad batch to a multiple of 8 so per-step slab slices are sublane-aligned.
    B_pad = _round_up(max(B, 1), 8)
    if B_pad != B:
        x = jnp.pad(x, ((0, B_pad - B), (0, 0), (0, 0)))

    # Time-major + flattened so step t's slab x_proj[t*B:(t+1)*B] is a
    # contiguous aligned block.  Negligible at these sizes; store x time-major
    # upstream at production T*B.
    x_tm = jnp.transpose(x, (1, 0, 2)).reshape(T * B_pad, D)

    kernel = functools.partial(
        _lstm_point_kernel, H=H, D=D, T=T, B=B_pad, G=G, LW=LW,
        offs=(meta["off_hh"], meta["off_b"], meta["off_mul"],
              meta["off_add"], meta["off_wout"], meta["off_bout"]))

    packed = pl.pallas_call(
        kernel,
        out_shape=jax.ShapeDtypeStruct((3, B_pad, LW), jnp.float32),
        in_specs=[pl.BlockSpec(memory_space=pltpu.MemorySpace.VMEM)] * 2,
        out_specs=pl.BlockSpec(memory_space=pltpu.MemorySpace.VMEM),
    )(x_tm, kparams["slab"])

    out = packed[0, :B, :O].reshape(-1, horizon, output_size)
    h_n = packed[1, :B, :H][None]
    c_n = packed[2, :B, :H][None]
    return out, (h_n, c_n)


def pack_params(params, *, horizon, output_size):
    """One-time offline packing of the PyTorch-order parameters:
      * gate permutation [i, f, g, o] -> [i, f, o, g]
      * fold the tanh-form-sigmoid 0.5 pre-scale into the i/f/o columns
      * zero-pad the output projection to a full 128-lane width
      * pack everything into ONE lane-dense f32 slab (single input DMA).
    """
    w_ih_T = params["w_ih_T"]
    w_hh_T = params["w_hh_T"]
    D = w_ih_T.shape[0]
    H = w_hh_T.shape[0]
    G = 4 * H
    O = horizon * output_size
    LW = max(_round_up(G, 128), _round_up(O, 128))

    def perm(w):   # PyTorch [i, f, g, o] -> kernel [i, f, o, g]
        return jnp.concatenate(
            [w[..., :2 * H], w[..., 3 * H:4 * H], w[..., 2 * H:3 * H]], axis=-1)

    # sigmoid(z) == 0.5 * tanh(0.5 * z) + 0.5  ->  fold the 0.5 into weights.
    prescale = jnp.concatenate([jnp.full((3 * H,), 0.5, jnp.float32),
                                jnp.ones((H,), jnp.float32)])
    w_ih = perm(w_ih_T).astype(jnp.float32) * prescale
    w_hh = perm(w_hh_T).astype(jnp.float32) * prescale
    b = (perm(params["b_gates"]).astype(jnp.float32) * prescale).reshape(G)
    mul_v = jnp.concatenate([jnp.full((3 * H,), 0.5, jnp.float32),
                             jnp.ones((H,), jnp.float32)])
    add_v = jnp.concatenate([jnp.full((3 * H,), 0.5, jnp.float32),
                             jnp.zeros((H,), jnp.float32)])

    off_hh = _round_up(D, 8)
    off_b = off_hh + _round_up(H, 8)
    off_mul = off_b + 8
    off_add = off_mul + 8
    off_wout = off_add + 8
    off_bout = off_wout + _round_up(H, 8)
    rows = off_bout + 8

    slab = jnp.zeros((rows, LW), jnp.float32)
    slab = slab.at[0:D, :G].set(w_ih)
    slab = slab.at[off_hh:off_hh + H, :G].set(w_hh)
    slab = slab.at[off_b, :G].set(b)
    slab = slab.at[off_mul, :G].set(mul_v)
    slab = slab.at[off_add, :G].set(add_v)
    slab = slab.at[off_wout:off_wout + H, :O].set(
        params["w_out_T"].astype(jnp.float32))
    slab = slab.at[off_bout, :O].set(
        params["b_out"].astype(jnp.float32).reshape(O))

    # TODO(synk): at production H/D, store this slab in bf16 (halves weight DMA
    # bytes); cast to f32 right after load on v5e (no bf16 VPU/EUP path).
    meta = dict(H=H, D=D, G=G, O=O, LW=LW, off_hh=off_hh, off_b=off_b,
                off_mul=off_mul, off_add=off_add, off_wout=off_wout,
                off_bout=off_bout)
    return {"slab": slab, "meta": meta}


def _reference_forward(x, params, *, horizon, output_size):
    """Pure-JAX reference (mirrors torch.nn.LSTM + Linear), PyTorch gate order."""
    x = x.astype(jnp.float32)
    B, T, D = x.shape
    H = params["w_hh_T"].shape[0]
    w_ih = params["w_ih_T"]
    w_hh = params["w_hh_T"]
    b = params["b_gates"]

    def step(carry, x_t):
        h, c = carry
        gates = x_t @ w_ih + h @ w_hh + b
        i_g = jax.nn.sigmoid(gates[:, 0 * H:1 * H])
        f_g = jax.nn.sigmoid(gates[:, 1 * H:2 * H])
        g_g = jnp.tanh(gates[:, 2 * H:3 * H])
        o_g = jax.nn.sigmoid(gates[:, 3 * H:4 * H])
        c_new = f_g * c + i_g * g_g
        h_new = o_g * jnp.tanh(c_new)
        return (h_new, c_new), None

    h0 = jnp.zeros((B, H), dtype=jnp.float32)
    c0 = jnp.zeros((B, H), dtype=jnp.float32)
    (h_n, c_n), _ = lax.scan(step, (h0, c0), jnp.transpose(x, (1, 0, 2)))
    out = (h_n @ params["w_out_T"] + params["b_out"]).reshape(
        -1, horizon, output_size)
    return out, (h_n[None], c_n[None])


def init_params(key, *, input_size, hidden_size, horizon, output_size):
    """Deterministic synthetic parameters with PyTorch-compatible semantics.

    PyTorch shapes: weight_ih_l0 (4H, D), weight_hh_l0 (4H, H),
    bias_ih_l0/bias_hh_l0 (4H,), Linear weight (O, H), bias (O,).
    Stored here transposed (matmul-friendly), PyTorch gate order [i, f, g, o].
    """
    k1, k2, k3, k4, k5, k6 = jax.random.split(key, 6)
    H, D, O = hidden_size, input_size, horizon * output_size
    scale = 1.0 / jnp.sqrt(jnp.float32(H))
    u = lambda k, shp: jax.random.uniform(k, shp, jnp.float32, -scale, scale)
    b_ih = u(k3, (4 * H,))
    b_hh = u(k4, (4 * H,))
    return {
        "w_ih_T": u(k1, (D, 4 * H)),
        "w_hh_T": u(k2, (H, 4 * H)),
        "b_gates": (b_ih + b_hh).reshape(1, 4 * H),
        "w_out_T": u(k5, (H, O)),
        "b_out": u(k6, (1, O)),
    }


if __name__ == "__main__":
    # Small, forward-consistent shapes:
    #   window_f (input_size) = 4, embedding_size = 32,
    #   horizon_l = 3, horizon_f (output_size) = 2, batch = 8, seq_len = 10.
    B, T, D = 8, 10, 4
    H = 32
    horizon, output_size = 3, 2

    key = jax.random.PRNGKey(0)
    k_x, k_p = jax.random.split(key)
    x = jax.random.normal(k_x, (B, T, D), dtype=jnp.float32)
    params = init_params(k_p, input_size=D, hidden_size=H,
                         horizon=horizon, output_size=output_size)
    kparams = pack_params(params, horizon=horizon, output_size=output_size)

    out, (h_n, c_n) = point_rnn_forward(x, kparams, horizon=horizon,
                                        output_size=output_size)
    jax.block_until_ready((out, h_n, c_n))

    # Validate against a pure-JAX reference of the PyTorch semantics
    # (reference uses the original, un-permuted, un-prescaled parameters).
    out_ref, (h_ref, c_ref) = _reference_forward(x, params, horizon=horizon,
                                                 output_size=output_size)
    assert out.shape == (B, horizon, output_size)
    assert h_n.shape == (1, B, H) and c_n.shape == (1, B, H)
    # Tolerance slightly loosened vs. 1e-5: the kernel uses the tanh form of
    # sigmoid (mathematically identical, tiny numerical differences).
    assert jnp.allclose(out, out_ref, atol=1e-4, rtol=1e-4)
    assert jnp.allclose(h_n, h_ref, atol=1e-4, rtol=1e-4)
    assert jnp.allclose(c_n, c_ref, atol=1e-4, rtol=1e-4)

    print("KERNEL_OK")
</pallas_src>

<mosaic_0001>
module attributes {stable_mosaic.version = 11 : i64} {
  func.func @_lstm_point_kernel(%arg0: memref<80x4xf32, #tpu.memory_space<vmem>>, %arg1: memref<104x128xf32, #tpu.memory_space<vmem>>, %arg2: memref<3x8x128xf32, #tpu.memory_space<vmem>>) attributes {dimension_semantics = [], scalar_prefetch = 0 : i64, scratch_operands = 0 : i64, tpu.core_type = #tpu.core_type<tc>} {
    %c0 = arith.constant 0 : index
    %c0_0 = arith.constant 0 : index
    %0 = vector.load %arg1[%c0, %c0_0] : memref<104x128xf32, #tpu.memory_space<vmem>>, vector<4x128xf32>
    %c8 = arith.constant 8 : index
    %c0_1 = arith.constant 0 : index
    %1 = vector.load %arg1[%c8, %c0_1] : memref<104x128xf32, #tpu.memory_space<vmem>>, vector<32x128xf32>
    %c40 = arith.constant 40 : index
    %c0_2 = arith.constant 0 : index
    %2 = vector.load %arg1[%c40, %c0_2] : memref<104x128xf32, #tpu.memory_space<vmem>>, vector<1x128xf32>
    %c48 = arith.constant 48 : index
    %c0_3 = arith.constant 0 : index
    %3 = vector.load %arg1[%c48, %c0_3] : memref<104x128xf32, #tpu.memory_space<vmem>>, vector<1x128xf32>
    %c56 = arith.constant 56 : index
    %c0_4 = arith.constant 0 : index
    %4 = vector.load %arg1[%c56, %c0_4] : memref<104x128xf32, #tpu.memory_space<vmem>>, vector<1x128xf32>
    %c64 = arith.constant 64 : index
    %c0_5 = arith.constant 0 : index
    %5 = vector.load %arg1[%c64, %c0_5] : memref<104x128xf32, #tpu.memory_space<vmem>>, vector<32x128xf32>
    %c96 = arith.constant 96 : index
    %c0_6 = arith.constant 0 : index
    %6 = vector.load %arg1[%c96, %c0_6] : memref<104x128xf32, #tpu.memory_space<vmem>>, vector<1x128xf32>
    %c0_7 = arith.constant 0 : index
    %c0_8 = arith.constant 0 : index
    %7 = vector.load %arg0[%c0_7, %c0_8] : memref<80x4xf32, #tpu.memory_space<vmem>>, vector<80x4xf32>
    %cst = arith.constant dense<0.000000e+00> : vector<80x128xf32>
    %8 = tpu.matmul %7, %0, %cst {dimension_numbers = #tpu.dot_dimension_numbers<[1], [0], [0], [1], [0, 0, 1, 1], [], []>} : vector<80x4xf32>, vector<4x128xf32>, vector<80x128xf32> -> vector<80x128xf32>
    %9 = vector.broadcast %2 : vector<1x128xf32> to vector<80x128xf32>
    %10 = arith.addf %8, %9 : vector<80x128xf32>
    %cst_9 = arith.constant 0.000000e+00 : f32
    %11 = vector.broadcast %cst_9 : f32 to vector<8x32xf32>
    %cst_10 = arith.constant 0.000000e+00 : f32
    %12 = vector.broadcast %cst_10 : f32 to vector<8x32xf32>
    %13 = vector.extract_strided_slice %10 {offsets = [0, 0], sizes = [8, 128], strides = [1, 1]} : vector<80x128xf32> to vector<8x128xf32>
    %cst_11 = arith.constant dense<0.000000e+00> : vector<8x128xf32>
    %14 = tpu.matmul %11, %1, %cst_11 {dimension_numbers = #tpu.dot_dimension_numbers<[1], [0], [0], [1], [0, 0, 1, 1], [], []>} : vector<8x32xf32>, vector<32x128xf32>, vector<8x128xf32> -> vector<8x128xf32>
    %15 = arith.addf %13, %14 : vector<8x128xf32>
    %16 = math.tanh %15 : vector<8x128xf32>
    %17 = vector.broadcast %3 : vector<1x128xf32> to vector<8x128xf32>
    %18 = arith.mulf %16, %17 : vector<8x128xf32>
    %19 = vector.broadcast %4 : vector<1x128xf32> to vector<8x128xf32>
    %20 = arith.addf %18, %19 : vector<8x128xf32>
    %21 = vector.extract_strided_slice %20 {offsets = [0, 0], sizes = [8, 32], strides = [1, 1]} : vector<8x128xf32> to vector<8x32xf32>
    %22 = vector.extract_strided_slice %20 {offsets = [0, 32], sizes = [8, 32], strides = [1, 1]} : vector<8x128xf32> to vector<8x32xf32>
    %23 = vector.extract_strided_slice %20 {offsets = [0, 64], sizes = [8, 32], strides = [1, 1]} : vector<8x128xf32> to vector<8x32xf32>
    %24 = vector.extract_strided_slice %20 {offsets = [0, 96], sizes = [8, 32], strides = [1, 1]} : vector<8x128xf32> to vector<8x32xf32>
    %25 = arith.mulf %22, %12 : vector<8x32xf32>
    %26 = arith.mulf %21, %24 : vector<8x32xf32>
    %27 = arith.addf %25, %26 : vector<8x32xf32>
    %28 = math.tanh %27 : vector<8x32xf32>
    %29 = arith.mulf %23, %28 : vector<8x32xf32>
    %30 = vector.extract_strided_slice %10 {offsets = [8, 0], sizes = [8, 128], strides = [1, 1]} : vector<80x128xf32> to vector<8x128xf32>
    %cst_12 = arith.constant dense<0.000000e+00> : vector<8x128xf32>
    %31 = tpu.matmul %29, %1, %cst_12 {dimension_numbers = #tpu.dot_dimension_numbers<[1], [0], [0], [1], [0, 0, 1, 1], [], []>} : vector<8x32xf32>, vector<32x128xf32>, vector<8x128xf32> -> vector<8x128xf32>
    %32 = arith.addf %30, %31 : vector<8x128xf32>
    %33 = math.tanh %32 : vector<8x128xf32>
    %34 = vector.broadcast %3 : vector<1x128xf32> to vector<8x128xf32>
    %35 = arith.mulf %33, %34 : vector<8x128xf32>
    %36 = vector.broadcast %4 : vector<1x128xf32> to vector<8x128xf32>
    %37 = arith.addf %35, %36 : vector<8x128xf32>
    %38 = vector.extract_strided_slice %37 {offsets = [0, 0], sizes = [8, 32], strides = [1, 1]} : vector<8x128xf32> to vector<8x32xf32>
    %39 = vector.extract_strided_slice %37 {offsets = [0, 32], sizes = [8, 32], strides = [1, 1]} : vector<8x128xf32> to vector<8x32xf32>
    %40 = vector.extract_strided_slice %37 {offsets = [0, 64], sizes = [8, 32], strides = [1, 1]} : vector<8x128xf32> to vector<8x32xf32>
    %41 = vector.extract_strided_slice %37 {offsets = [0, 96], sizes = [8, 32], strides = [1, 1]} : vector<8x128xf32> to vector<8x32xf32>
    %42 = arith.mulf %39, %27 : vector<8x32xf32>
    %43 = arith.mulf %38, %41 : vector<8x32xf32>
    %44 = arith.addf %42, %43 : vector<8x32xf32>
    %45 = math.tanh %44 : vector<8x32xf32>
    %46 = arith.mulf %40, %45 : vector<8x32xf32>
    %47 = vector.extract_strided_slice %10 {offsets = [16, 0], sizes = [8, 128], strides = [1, 1]} : vector<80x128xf32> to vector<8x128xf32>
    %cst_13 = arith.constant dense<0.000000e+00> : vector<8x128xf32>
    %48 = tpu.matmul %46, %1, %cst_13 {dimension_numbers = #tpu.dot_dimension_numbers<[1], [0], [0], [1], [0, 0, 1, 1], [], []>} : vector<8x32xf32>, vector<32x128xf32>, vector<8x128xf32> -> vector<8x128xf32>
    %49 = arith.addf %47, %48 : vector<8x128xf32>
    %50 = math.tanh %49 : vector<8x128xf32>
    %51 = vector.broadcast %3 : vector<1x128xf32> to vector<8x128xf32>
    %52 = arith.mulf %50, %51 : vector<8x128xf32>
    %53 = vector.broadcast %4 : vector<1x128xf32> to vector<8x128xf32>
    %54 = arith.addf %52, %53 : vector<8x128xf32>
    %55 = vector.extract_strided_slice %54 {offsets = [0, 0], sizes = [8, 32], strides = [1, 1]} : vector<8x128xf32> to vector<8x32xf32>
    %56 = vector.extract_strided_slice %54 {offsets = [0, 32], sizes = [8, 32], strides = [1, 1]} : vector<8x128xf32> to vector<8x32xf32>
    %57 = vector.extract_strided_slice %54 {offsets = [0, 64], sizes = [8, 32], strides = [1, 1]} : vector<8x128xf32> to vector<8x32xf32>
    %58 = vector.extract_strided_slice %54 {offsets = [0, 96], sizes = [8, 32], strides = [1, 1]} : vector<8x128xf32> to vector<8x32xf32>
    %59 = arith.mulf %56, %44 : vector<8x32xf32>
    %60 = arith.mulf %55, %58 : vector<8x32xf32>
    %61 = arith.addf %59, %60 : vector<8x32xf32>
    %62 = math.tanh %61 : vector<8x32xf32>
    %63 = arith.mulf %57, %62 : vector<8x32xf32>
    %64 = vector.extract_strided_slice %10 {offsets = [24, 0], sizes = [8, 128], strides = [1, 1]} : vector<80x128xf32> to vector<8x128xf32>
    %cst_14 = arith.constant dense<0.000000e+00> : vector<8x128xf32>
    %65 = tpu.matmul %63, %1, %cst_14 {dimension_numbers = #tpu.dot_dimension_numbers<[1], [0], [0], [1], [0, 0, 1, 1], [], []>} : vector<8x32xf32>, vector<32x128xf32>, vector<8x128xf32> -> vector<8x128xf32>
    %66 = arith.addf %64, %65 : vector<8x128xf32>
    %67 = math.tanh %66 : vector<8x128xf32>
    %68 = vector.broadcast %3 : vector<1x128xf32> to vector<8x128xf32>
    %69 = arith.mulf %67, %68 : vector<8x128xf32>
    %70 = vector.broadcast %4 : vector<1x128xf32> to vector<8x128xf32>
    %71 = arith.addf %69, %70 : vector<8x128xf32>
    %72 = vector.extract_strided_slice %71 {offsets = [0, 0], sizes = [8, 32], strides = [1, 1]} : vector<8x128xf32> to vector<8x32xf32>
    %73 = vector.extract_strided_slice %71 {offsets = [0, 32], sizes = [8, 32], strides = [1, 1]} : vector<8x128xf32> to vector<8x32xf32>
    %74 = vector.extract_strided_slice %71 {offsets = [0, 64], sizes = [8, 32], strides = [1, 1]} : vector<8x128xf32> to vector<8x32xf32>
    %75 = vector.extract_strided_slice %71 {offsets = [0, 96], sizes = [8, 32], strides = [1, 1]} : vector<8x128xf32> to vector<8x32xf32>
    %76 = arith.mulf %73, %61 : vector<8x32xf32>
    %77 = arith.mulf %72, %75 : vector<8x32xf32>
    %78 = arith.addf %76, %77 : vector<8x32xf32>
    %79 = math.tanh %78 : vector<8x32xf32>
    %80 = arith.mulf %74, %79 : vector<8x32xf32>
    %81 = vector.extract_strided_slice %10 {offsets = [32, 0], sizes = [8, 128], strides = [1, 1]} : vector<80x128xf32> to vector<8x128xf32>
    %cst_15 = arith.constant dense<0.000000e+00> : vector<8x128xf32>
    %82 = tpu.matmul %80, %1, %cst_15 {dimension_numbers = #tpu.dot_dimension_numbers<[1], [0], [0], [1], [0, 0, 1, 1], [], []>} : vector<8x32xf32>, vector<32x128xf32>, vector<8x128xf32> -> vector<8x128xf32>
    %83 = arith.addf %81, %82 : vector<8x128xf32>
    %84 = math.tanh %83 : vector<8x128xf32>
    %85 = vector.broadcast %3 : vector<1x128xf32> to vector<8x128xf32>
    %86 = arith.mulf %84, %85 : vector<8x128xf32>
    %87 = vector.broadcast %4 : vector<1x128xf32> to vector<8x128xf32>
    %88 = arith.addf %86, %87 : vector<8x128xf32>
    %89 = vector.extract_strided_slice %88 {offsets = [0, 0], sizes = [8, 32], strides = [1, 1]} : vector<8x128xf32> to vector<8x32xf32>
    %90 = vector.extract_strided_slice %88 {offsets = [0, 32], sizes = [8, 32], strides = [1, 1]} : vector<8x128xf32> to vector<8x32xf32>
    %91 = vector.extract_strided_slice %88 {offsets = [0, 64], sizes = [8, 32], strides = [1, 1]} : vector<8x128xf32> to vector<8x32xf32>
    %92 = vector.extract_strided_slice %88 {offsets = [0, 96], sizes = [8, 32], strides = [1, 1]} : vector<8x128xf32> to vector<8x32xf32>
    %93 = arith.mulf %90, %78 : vector<8x32xf32>
    %94 = arith.mulf %89, %92 : vector<8x32xf32>
    %95 = arith.addf %93, %94 : vector<8x32xf32>
    %96 = math.tanh %95 : vector<8x32xf32>
    %97 = arith.mulf %91, %96 : vector<8x32xf32>
    %98 = vector.extract_strided_slice %10 {offsets = [40, 0], sizes = [8, 128], strides = [1, 1]} : vector<80x128xf32> to vector<8x128xf32>
    %cst_16 = arith.constant dense<0.000000e+00> : vector<8x128xf32>
    %99 = tpu.matmul %97, %1, %cst_16 {dimension_numbers = #tpu.dot_dimension_numbers<[1], [0], [0], [1], [0, 0, 1, 1], [], []>} : vector<8x32xf32>, vector<32x128xf32>, vector<8x128xf32> -> vector<8x128xf32>
    %100 = arith.addf %98, %99 : vector<8x128xf32>
    %101 = math.tanh %100 : vector<8x128xf32>
    %102 = vector.broadcast %3 : vector<1x128xf32> to vector<8x128xf32>
    %103 = arith.mulf %101, %102 : vector<8x128xf32>
    %104 = vector.broadcast %4 : vector<1x128xf32> to vector<8x128xf32>
    %105 = arith.addf %103, %104 : vector<8x128xf32>
    %106 = vector.extract_strided_slice %105 {offsets = [0, 0], sizes = [8, 32], strides = [1, 1]} : vector<8x128xf32> to vector<8x32xf32>
    %107 = vector.extract_strided_slice %105 {offsets = [0, 32], sizes = [8, 32], strides = [1, 1]} : vector<8x128xf32> to vector<8x32xf32>
    %108 = vector.extract_strided_slice %105 {offsets = [0, 64], sizes = [8, 32], strides = [1, 1]} : vector<8x128xf32> to vector<8x32xf32>
    %109 = vector.extract_strided_slice %105 {offsets = [0, 96], sizes = [8, 32], strides = [1, 1]} : vector<8x128xf32> to vector<8x32xf32>
    %110 = arith.mulf %107, %95 : vector<8x32xf32>
    %111 = arith.mulf %106, %109 : vector<8x32xf32>
    %112 = arith.addf %110, %111 : vector<8x32xf32>
    %113 = math.tanh %112 : vector<8x32xf32>
    %114 = arith.mulf %108, %113 : vector<8x32xf32>
    %115 = vector.extract_strided_slice %10 {offsets = [48, 0], sizes = [8, 128], strides = [1, 1]} : vector<80x128xf32> to vector<8x128xf32>
    %cst_17 = arith.constant dense<0.000000e+00> : vector<8x128xf32>
    %116 = tpu.matmul %114, %1, %cst_17 {dimension_numbers = #tpu.dot_dimension_numbers<[1], [0], [0], [1], [0, 0, 1, 1], [], []>} : vector<8x32xf32>, vector<32x128xf32>, vector<8x128xf32> -> vector<8x128xf32>
    %117 = arith.addf %115, %116 : vector<8x128xf32>
    %118 = math.tanh %117 : vector<8x128xf32>
    %119 = vector.broadcast %3 : vector<1x128xf32> to vector<8x128xf32>
    %120 = arith.mulf %118, %119 : vector<8x128xf32>
    %121 = vector.broadcast %4 : vector<1x128xf32> to vector<8x128xf32>
    %122 = arith.addf %120, %121 : vector<8x128xf32>
    %123 = vector.extract_strided_slice %122 {offsets = [0, 0], sizes = [8, 32], strides = [1, 1]} : vector<8x128xf32> to vector<8x32xf32>
    %124 = vector.extract_strided_slice %122 {offsets = [0, 32], sizes = [8, 32], strides = [1, 1]} : vector<8x128xf32> to vector<8x32xf32>
    %125 = vector.extract_strided_slice %122 {offsets = [0, 64], sizes = [8, 32], strides = [1, 1]} : vector<8x128xf32> to vector<8x32xf32>
    %126 = vector.extract_strided_slice %122 {offsets = [0, 96], sizes = [8, 32], strides = [1, 1]} : vector<8x128xf32> to vector<8x32xf32>
    %127 = arith.mulf %124, %112 : vector<8x32xf32>
    %128 = arith.mulf %123, %126 : vector<8x32xf32>
    %129 = arith.addf %127, %128 : vector<8x32xf32>
    %130 = math.tanh %129 : vector<8x32xf32>
    %131 = arith.mulf %125, %130 : vector<8x32xf32>
    %132 = vector.extract_strided_slice %10 {offsets = [56, 0], sizes = [8, 128], strides = [1, 1]} : vector<80x128xf32> to vector<8x128xf32>
    %cst_18 = arith.constant dense<0.000000e+00> : vector<8x128xf32>
    %133 = tpu.matmul %131, %1, %cst_18 {dimension_numbers = #tpu.dot_dimension_numbers<[1], [0], [0], [1], [0, 0, 1, 1], [], []>} : vector<8x32xf32>, vector<32x128xf32>, vector<8x128xf32> -> vector<8x128xf32>
    %134 = arith.addf %132, %133 : vector<8x128xf32>
    %135 = math.tanh %134 : vector<8x128xf32>
    %136 = vector.broadcast %3 : vector<1x128xf32> to vector<8x128xf32>
    %137 = arith.mulf %135, %136 : vector<8x128xf32>
    %138 = vector.broadcast %4 : vector<1x128xf32> to vector<8x128xf32>
    %139 = arith.addf %137, %138 : vector<8x128xf32>
    %140 = vector.extract_strided_slice %139 {offsets = [0, 0], sizes = [8, 32], strides = [1, 1]} : vector<8x128xf32> to vector<8x32xf32>
    %141 = vector.extract_strided_slice %139 {offsets = [0, 32], sizes = [8, 32], strides = [1, 1]} : vector<8x128xf32> to vector<8x32xf32>
    %142 = vector.extract_strided_slice %139 {offsets = [0, 64], sizes = [8, 32], strides = [1, 1]} : vector<8x128xf32> to vector<8x32xf32>
    %143 = vector.extract_strided_slice %139 {offsets = [0, 96], sizes = [8, 32], strides = [1, 1]} : vector<8x128xf32> to vector<8x32xf32>
    %144 = arith.mulf %141, %129 : vector<8x32xf32>
    %145 = arith.mulf %140, %143 : vector<8x32xf32>
    %146 = arith.addf %144, %145 : vector<8x32xf32>
    %147 = math.tanh %146 : vector<8x32xf32>
    %148 = arith.mulf %142, %147 : vector<8x32xf32>
    %149 = vector.extract_strided_slice %10 {offsets = [64, 0], sizes = [8, 128], strides = [1, 1]} : vector<80x128xf32> to vector<8x128xf32>
    %cst_19 = arith.constant dense<0.000000e+00> : vector<8x128xf32>
    %150 = tpu.matmul %148, %1, %cst_19 {dimension_numbers = #tpu.dot_dimension_numbers<[1], [0], [0], [1], [0, 0, 1, 1], [], []>} : vector<8x32xf32>, vector<32x128xf32>, vector<8x128xf32> -> vector<8x128xf32>
    %151 = arith.addf %149, %150 : vector<8x128xf32>
    %152 = math.tanh %151 : vector<8x128xf32>
    %153 = vector.broadcast %3 : vector<1x128xf32> to vector<8x128xf32>
    %154 = arith.mulf %152, %153 : vector<8x128xf32>
    %155 = vector.broadcast %4 : vector<1x128xf32> to vector<8x128xf32>
    %156 = arith.addf %154, %155 : vector<8x128xf32>
    %157 = vector.extract_strided_slice %156 {offsets = [0, 0], sizes = [8, 32], strides = [1, 1]} : vector<8x128xf32> to vector<8x32xf32>
    %158 = vector.extract_strided_slice %156 {offsets = [0, 32], sizes = [8, 32], strides = [1, 1]} : vector<8x128xf32> to vector<8x32xf32>
    %159 = vector.extract_strided_slice %156 {offsets = [0, 64], sizes = [8, 32], strides = [1, 1]} : vector<8x128xf32> to vector<8x32xf32>
    %160 = vector.extract_strided_slice %156 {offsets = [0, 96], sizes = [8, 32], strides = [1, 1]} : vector<8x128xf32> to vector<8x32xf32>
    %161 = arith.mulf %158, %146 : vector<8x32xf32>
    %162 = arith.mulf %157, %160 : vector<8x32xf32>
    %163 = arith.addf %161, %162 : vector<8x32xf32>
    %164 = math.tanh %163 : vector<8x32xf32>
    %165 = arith.mulf %159, %164 : vector<8x32xf32>
    %166 = vector.extract_strided_slice %10 {offsets = [72, 0], sizes = [8, 128], strides = [1, 1]} : vector<80x128xf32> to vector<8x128xf32>
    %cst_20 = arith.constant dense<0.000000e+00> : vector<8x128xf32>
    %167 = tpu.matmul %165, %1, %cst_20 {dimension_numbers = #tpu.dot_dimension_numbers<[1], [0], [0], [1], [0, 0, 1, 1], [], []>} : vector<8x32xf32>, vector<32x128xf32>, vector<8x128xf32> -> vector<8x128xf32>
    %168 = arith.addf %166, %167 : vector<8x128xf32>
    %169 = math.tanh %168 : vector<8x128xf32>
    %170 = vector.broadcast %3 : vector<1x128xf32> to vector<8x128xf32>
    %171 = arith.mulf %169, %170 : vector<8x128xf32>
    %172 = vector.broadcast %4 : vector<1x128xf32> to vector<8x128xf32>
    %173 = arith.addf %171, %172 : vector<8x128xf32>
    %174 = vector.extract_strided_slice %173 {offsets = [0, 0], sizes = [8, 32], strides = [1, 1]} : vector<8x128xf32> to vector<8x32xf32>
    %175 = vector.extract_strided_slice %173 {offsets = [0, 32], sizes = [8, 32], strides = [1, 1]} : vector<8x128xf32> to vector<8x32xf32>
    %176 = vector.extract_strided_slice %173 {offsets = [0, 64], sizes = [8, 32], strides = [1, 1]} : vector<8x128xf32> to vector<8x32xf32>
    %177 = vector.extract_strided_slice %173 {offsets = [0, 96], sizes = [8, 32], strides = [1, 1]} : vector<8x128xf32> to vector<8x32xf32>
    %178 = arith.mulf %175, %163 : vector<8x32xf32>
    %179 = arith.mulf %174, %177 : vector<8x32xf32>
    %180 = arith.addf %178, %179 : vector<8x32xf32>
    %181 = math.tanh %180 : vector<8x32xf32>
    %182 = arith.mulf %176, %181 : vector<8x32xf32>
    %cst_21 = arith.constant 0.000000e+00 : f32
    %183 = vector.broadcast %cst_21 : f32 to vector<8x96xf32>
    %cst_22 = arith.constant dense<0.000000e+00> : vector<8x128xf32>
    %184 = tpu.matmul %182, %5, %cst_22 {dimension_numbers = #tpu.dot_dimension_numbers<[1], [0], [0], [1], [0, 0, 1, 1], [], []>} : vector<8x32xf32>, vector<32x128xf32>, vector<8x128xf32> -> vector<8x128xf32>
    %185 = vector.broadcast %6 : vector<1x128xf32> to vector<8x128xf32>
    %186 = arith.addf %184, %185 : vector<8x128xf32>
    %c0_23 = arith.constant 0 : index
    %c0_24 = arith.constant 0 : index
    %c0_25 = arith.constant 0 : index
    %187 = vector.load %arg2[%c0_23, %c0_24, %c0_25] : memref<3x8x128xf32, #tpu.memory_space<vmem>>, vector<1x8x128xf32>
    %188 = vector.shape_cast %187 : vector<1x8x128xf32> to vector<8x128xf32>
    %189 = vector.shape_cast %186 : vector<8x128xf32> to vector<1x8x128xf32>
    tpu.vector_store %arg2[%c0_23, %c0_24, %c0_25], %189 {strides = array<i32>} : memref<3x8x128xf32, #tpu.memory_space<vmem>>, vector<1x8x128xf32>,
    %190 = tpu.concatenate %182, %183 in 1 : vector<8x32xf32>, vector<8x96xf32> -> vector<8x128xf32>
    %c1 = arith.constant 1 : index
    %c0_26 = arith.constant 0 : index
    %c0_27 = arith.constant 0 : index
    %191 = vector.load %arg2[%c1, %c0_26, %c0_27] : memref<3x8x128xf32, #tpu.memory_space<vmem>>, vector<1x8x128xf32>
    %192 = vector.shape_cast %191 : vector<1x8x128xf32> to vector<8x128xf32>
    %193 = vector.shape_cast %190 : vector<8x128xf32> to vector<1x8x128xf32>
    tpu.vector_store %arg2[%c1, %c0_26, %c0_27], %193 {strides = array<i32>} : memref<3x8x128xf32, #tpu.memory_space<vmem>>, vector<1x8x128xf32>,
    %194 = tpu.concatenate %180, %183 in 1 : vector<8x32xf32>, vector<8x96xf32> -> vector<8x128xf32>
    %c2 = arith.constant 2 : index
    %c0_28 = arith.constant 0 : index
    %c0_29 = arith.constant 0 : index
    %195 = vector.load %arg2[%c2, %c0_28, %c0_29] : memref<3x8x128xf32, #tpu.memory_space<vmem>>, vector<1x8x128xf32>
    %196 = vector.shape_cast %195 : vector<1x8x128xf32> to vector<8x128xf32>
    %197 = vector.shape_cast %194 : vector<8x128xf32> to vector<1x8x128xf32>
    tpu.vector_store %arg2[%c2, %c0_28, %c0_29], %197 {strides = array<i32>} : memref<3x8x128xf32, #tpu.memory_space<vmem>>, vector<1x8x128xf32>,
    return
  }
}

</mosaic_0001>

<llo_original>
// kernel: tpu_custom_call.1
$region0: #{tpu_custom_call.1}
  #allocation0 [shape = 'u32[]', space=smem, size = 0x4, offset = 0x4, fixed_abs, tag = 'smem constant byte address 0x4 - core index']
  #allocation1 [shape = 'u32[72,128]{1,0:T(1,128)}', space=vmem, size = 0x9000, scoped, tag = 'internal scratch']
  %s0 = inlined_call_operand.vmem [shape: f32[80,4], index: 0, kind: input, shape index: {}]
  %s1 = inlined_call_operand.hbm [shape: f32[104,128], index: 1, kind: input, shape index: {}]
  %s2 = inlined_call_operand.hbm [shape: f32[3,8,128], index: 2, kind: output, shape index: {}]
  %s3 = sld [smem:[#allocation0]]
  $region22: #{tpu_custom_call.1} parent=0
    _
  %s5 = ssub.s32 1, %s3
  %s6 = scalar_select 0, %s5, %s3
  $region1: #{tpu_custom_call.1} parent=0
    #allocation2 [shape = 'u8[53248]{0}', space=vmem, size = 0xd000, scoped, tag = 'input window, operand 1, single buffered']
    #allocation3 [shape = 's32[1]{0}', space=sflag, size = 0x4, scoped, tag = 'scoped memory for tpu_custom_call.1']
    #allocation4 [shape = 's32[1]{0}', space=sflag, size = 0x4, scoped, tag = 'scoped memory for tpu_custom_call.1']
    #allocation5 [shape = 'u8[12288]{0}', space=vmem, size = 0x3000, scoped, tag = 'output window, operand 0, single buffered']
    %7 = vsyncpa [#allocation3], 0
    %8 = vsyncpa [#allocation4], 0
    // Predicated region
    $region2: #{tpu_custom_call.1} parent=1 // pred_check
      _
    $region3: #{tpu_custom_call.1} parent=1 // pred_check_branch
      %10 = sbr.rel (0) target = $region5
    $region4: #{tpu_custom_call.1} parent=1 // pred_region
      _
    $region5: #{tpu_custom_call.1} parent=1 // pred_fallthru
      _
    // Predicated region
    $region6: #{tpu_custom_call.1} parent=1 // pred_check
      _
    $region7: #{tpu_custom_call.1} parent=1 // pred_check_branch
      %12 = sbr.rel (0) target = $region9
    $region8: #{tpu_custom_call.1} parent=1 // pred_region
      %14 = vsyncadd [#allocation3], 0
      %s15 = sshll.u32 %s1, 4
      %s16 = int_to_ptr.hbm [resolvable:$true] %s15
      %s17 = sshll.u32 [#allocation2], 4
      %s18 = int_to_ptr.vmem [resolvable:$true] %s17
      %23 = dma.hbm_to_vmem [thread:$0]  %s16, 1664, %s18, [#allocation3], 128, 128, 8
    $region9: #{tpu_custom_call.1} parent=1 // pred_fallthru
      _
    // Predicated region
    $region10: #{tpu_custom_call.1} parent=1 // pred_check
      _
    $region11: #{tpu_custom_call.1} parent=1 // pred_check_branch
      %25 = sbr.rel (0) target = $region13
    $region12: #{tpu_custom_call.1} parent=1 // pred_region
      %27 = dma.done [#allocation3], 1664
    $region13: #{tpu_custom_call.1} parent=1 // pred_fallthru
      _
    %v28 = vld [vmem:[#allocation2] sm:$0xf]
    %v29 = vld [vmem:[#allocation2 + $0x8] sm:$0xff]
    %v30 = vld [vmem:[#allocation2 + $0x10] sm:$0xff]
    %v31 = vld [vmem:[#allocation2 + $0x18] sm:$0xff]
    %v32 = vld [vmem:[#allocation2 + $0x20] sm:$0xff]
    %v33 = vld [vmem:[#allocation2 + $0x28] sm:$0x1]
    %v34 = vld [vmem:[#allocation2 + $0x30] sm:$0x1]
    %v35 = vld [vmem:[#allocation2 + $0x38] sm:$0x1]
    %v36 = vld [vmem:[#allocation2 + $0x40] sm:$0xff]
    %v37 = vld [vmem:[#allocation2 + $0x48] sm:$0xff]
    %v38 = vld [vmem:[#allocation2 + $0x50] sm:$0xff]
    %v39 = vld [vmem:[#allocation2 + $0x58] sm:$0xff]
    %v40 = vld [vmem:[#allocation2 + $0x60] sm:$0x1]
    %v41 = vld [vmem:[%s0] sm:$0xff]
    %v42 = vld [vmem:[%s0 + $0x8] sm:$0xff]
    %v43 = vld [vmem:[%s0 + $0x10] sm:$0xff]
    %v44 = vld [vmem:[%s0 + $0x18] sm:$0xff]
    %v45 = vld [vmem:[%s0 + $0x20] sm:$0xff]
    %v46 = vld [vmem:[%s0 + $0x28] sm:$0xff]
    %v47 = vld [vmem:[%s0 + $0x30] sm:$0xff]
    %v48 = vld [vmem:[%s0 + $0x38] sm:$0xff]
    %v49 = vld [vmem:[%s0 + $0x40] sm:$0xff]
    %v50 = vld [vmem:[%s0 + $0x48] sm:$0xff]
    %v51 = vperm.slane %v33, 0
    %vm52 = vcmask 31744
    %v54 = vsel %vm52, %v41, 0
    %v57 = vsel %vm52, %v42, 0
    %v60 = vsel %vm52, %v43, 0
    %v63 = vsel %vm52, %v44, 0
    %v66 = vsel %vm52, %v45, 0
    %v69 = vsel %vm52, %v46, 0
    %v72 = vsel %vm52, %v47, 0
    %v75 = vsel %vm52, %v48, 0
    %v78 = vsel %vm52, %v49, 0
    %v81 = vsel %vm52, %v50, 0
    %vm83 = vcmask 1043456
    %v85 = vsel %vm83, %v28, 0
    %87 = vmatpush.msra.mxu0 0.0
    %88 = vmatpush.msra.mxu0 0.0
    %89 = vmatpush.msra.mxu0 0.0
    %90 = vmatpush.msra.mxu0 0.0
    %91 = vmatpush.msra.mxu0 0.0
    %92 = vmatpush.msra.mxu0 0.0
    %93 = vmatpush.msra.mxu0 0.0
    %94 = vmatpush.msra.mxu0 0.0
    %95 = vmatpush.msra.mxu0 0.0
    %96 = vmatpush.msra.mxu0 0.0
    %97 = vmatpush.msra.mxu0 0.0
    %98 = vmatpush.msra.mxu0 0.0
    %99 = vmatpush.msra.mxu0 0.0
    %100 = vmatpush.msra.mxu0 0.0
    %101 = vmatpush.msra.mxu0 0.0
    %102 = vmatpush.msra.mxu0 %v85
    %103 = vmatmul.f32.gmra.mxu0 %v54
    %v104 = vpop.f32.mrf.mxu0
    %v105 = vadd.f32 %v51, %v104
    %106 = vmatmul.f32.gmra.mxu0 %v57
    %v107 = vpop.f32.mrf.mxu0
    %v108 = vadd.f32 %v51, %v107
    %109 = vmatmul.f32.gmra.mxu0 %v60
    %v110 = vpop.f32.mrf.mxu0
    %v111 = vadd.f32 %v51, %v110
    %112 = vmatmul.f32.gmra.mxu0 %v63
    %v113 = vpop.f32.mrf.mxu0
    %v114 = vadd.f32 %v51, %v113
    %115 = vmatmul.f32.gmra.mxu0 %v66
    %v116 = vpop.f32.mrf.mxu0
    %v117 = vadd.f32 %v51, %v116
    %118 = vmatmul.f32.gmra.mxu0 %v69
    %v119 = vpop.f32.mrf.mxu0
    %v120 = vadd.f32 %v51, %v119
    %121 = vmatmul.f32.gmra.mxu0 %v72
    %v122 = vpop.f32.mrf.mxu0
    %v123 = vadd.f32 %v51, %v122
    %124 = vmatmul.f32.gmra.mxu0 %v75
    %v125 = vpop.f32.mrf.mxu0
    %v126 = vadd.f32 %v51, %v125
    %127 = vmatmul.f32.gmra.mxu0 %v78
    %v128 = vpop.f32.mrf.mxu0
    %v129 = vadd.f32 %v51, %v128
    %130 = vmatmul.f32.gmra.mxu0 %v81
    %v131 = vpop.f32.mrf.mxu0
    %v132 = vadd.f32 %v51, %v131
    %133 = vdwg.mxu0
    %vm134 = vcmask 261120
    %v136 = vsel %vm134, 0.0, 0
    %138 = vmatpush.msra.mxu0 0.0
    %139 = vmatpush.msra.mxu0 0.0
    %140 = vmatpush.msra.mxu0 0.0
    %141 = vmatpush.msra.mxu0 0.0
    %142 = vmatpush.msra.mxu0 0.0
    %143 = vmatpush.msra.mxu0 0.0
    %144 = vmatpush.msra.mxu0 0.0
    %145 = vmatpush.msra.mxu0 0.0
    %146 = vmatpush.msra.mxu0 0.0
    %147 = vmatpush.msra.mxu0 0.0
    %148 = vmatpush.msra.mxu0 0.0
    %149 = vmatpush.msra.mxu0 0.0
    %150 = vmatpush.msra.mxu0 %v32
    %151 = vmatpush.msra.mxu0 %v31
    %152 = vmatpush.msra.mxu0 %v30
    %153 = vmatpush.msra.mxu0 %v29
    %154 = vmatmul.f32.gmra.mxu0 %v136
    %v155 = vpop.f32.mrf.mxu0
    %v156 = vadd.f32 0.0, %v155
    %157 = vdwg.mxu0
    %v158 = vadd.f32 %v105, %v156
    %v159 = vtanh.pop %v158
    %v160 = vperm.slane %v34, 0
    %v161 = vmul.f32 %v159, %v160
    %v162 = vperm.slane %v35, 0
    %v163 = vadd.f32 %v161, %v162
    %v164 = vmul.f32 %v163, 0.0
    %166 = vrot.lane.b32.xlu0 %v163, 32
    %v167 = vpop.permute.xlu0 %166
    %v169 = vmul.f32 %v163, %v167
    %171 = vrot.lane.b32.xlu0 %v169, 32
    %v172 = vpop.permute.xlu0 %171
    %v174 = vadd.f32 %v164, %v172
    %v175 = vtanh.pop %v174
    %177 = vrot.lane.b32.xlu0 %v175, 32
    %v178 = vpop.permute.xlu0 %177
    %v180 = vmul.f32 %v163, %v178
    %182 = vrot.lane.b32.xlu0 %v180, 64
    %v183 = vpop.permute.xlu0 %182
    %v184 = vsel %vm134, %v183, 0
    %186 = vmatpush.msra.mxu0 0.0
    %187 = vmatpush.msra.mxu0 0.0
    %188 = vmatpush.msra.mxu0 0.0
    %189 = vmatpush.msra.mxu0 0.0
    %190 = vmatpush.msra.mxu0 0.0
    %191 = vmatpush.msra.mxu0 0.0
    %192 = vmatpush.msra.mxu0 0.0
    %193 = vmatpush.msra.mxu0 0.0
    %194 = vmatpush.msra.mxu0 0.0
    %195 = vmatpush.msra.mxu0 0.0
    %196 = vmatpush.msra.mxu0 0.0
    %197 = vmatpush.msra.mxu0 0.0
    %198 = vmatpush.msra.mxu0 %v32
    %199 = vmatpush.msra.mxu0 %v31
    %200 = vmatpush.msra.mxu0 %v30
    %201 = vmatpush.msra.mxu0 %v29
    %202 = vmatmul.f32.gmra.mxu0 %v184
    %v203 = vpop.f32.mrf.mxu0
    %v204 = vadd.f32 0.0, %v203
    %205 = vdwg.mxu0
    %v206 = vadd.f32 %v108, %v204
    %v207 = vtanh.pop %v206
    %v208 = vmul.f32 %v207, %v160
    %v209 = vadd.f32 %v208, %v162
    %v210 = vmul.f32 %v209, %v174
    %212 = vrot.lane.b32.xlu0 %v209, 32
    %v213 = vpop.permute.xlu0 %212
    %v215 = vmul.f32 %v209, %v213
    %217 = vrot.lane.b32.xlu0 %v215, 32
    %v218 = vpop.permute.xlu0 %217
    %v220 = vadd.f32 %v210, %v218
    %v221 = vtanh.pop %v220
    %223 = vrot.lane.b32.xlu0 %v221, 32
    %v224 = vpop.permute.xlu0 %223
    %v226 = vmul.f32 %v209, %v224
    %228 = vrot.lane.b32.xlu0 %v226, 64
    %v229 = vpop.permute.xlu0 %228
    %v230 = vsel %vm134, %v229, 0
    %232 = vmatpush.msra.mxu0 0.0
    %233 = vmatpush.msra.mxu0 0.0
    %234 = vmatpush.msra.mxu0 0.0
    %235 = vmatpush.msra.mxu0 0.0
    %236 = vmatpush.msra.mxu0 0.0
    %237 = vmatpush.msra.mxu0 0.0
    %238 = vmatpush.msra.mxu0 0.0
    %239 = vmatpush.msra.mxu0 0.0
    %240 = vmatpush.msra.mxu0 0.0
    %241 = vmatpush.msra.mxu0 0.0
    %242 = vmatpush.msra.mxu0 0.0
    %243 = vmatpush.msra.mxu0 0.0
    %244 = vmatpush.msra.mxu0 %v32
    %245 = vmatpush.msra.mxu0 %v31
    %246 = vmatpush.msra.mxu0 %v30
    %247 = vmatpush.msra.mxu0 %v29
    %248 = vmatmul.f32.gmra.mxu0 %v230
    %v249 = vpop.f32.mrf.mxu0
    %v250 = vadd.f32 0.0, %v249
    %251 = vdwg.mxu0
    %v252 = vadd.f32 %v111, %v250
    %v253 = vtanh.pop %v252
    %v254 = vmul.f32 %v253, %v160
    %v255 = vadd.f32 %v254, %v162
    %v256 = vmul.f32 %v255, %v220
    %258 = vrot.lane.b32.xlu0 %v255, 32
    %v259 = vpop.permute.xlu0 %258
    %v261 = vmul.f32 %v255, %v259
    %263 = vrot.lane.b32.xlu0 %v261, 32
    %v264 = vpop.permute.xlu0 %263
    %v266 = vadd.f32 %v256, %v264
    %v267 = vtanh.pop %v266
    %269 = vrot.lane.b32.xlu0 %v267, 32
    %v270 = vpop.permute.xlu0 %269
    %v272 = vmul.f32 %v255, %v270
    %274 = vrot.lane.b32.xlu0 %v272, 64
    %v275 = vpop.permute.xlu0 %274
    %v276 = vsel %vm134, %v275, 0
    %278 = vmatpush.msra.mxu0 0.0
    %279 = vmatpush.msra.mxu0 0.0
    %280 = vmatpush.msra.mxu0 0.0
    %281 = vmatpush.msra.mxu0 0.0
    %282 = vmatpush.msra.mxu0 0.0
    %283 = vmatpush.msra.mxu0 0.0
    %284 = vmatpush.msra.mxu0 0.0
    %285 = vmatpush.msra.mxu0 0.0
    %286 = vmatpush.msra.mxu0 0.0
    %287 = vmatpush.msra.mxu0 0.0
    %288 = vmatpush.msra.mxu0 0.0
    %289 = vmatpush.msra.mxu0 0.0
    %290 = vmatpush.msra.mxu0 %v32
    %291 = vmatpush.msra.mxu0 %v31
    %292 = vmatpush.msra.mxu0 %v30
    %293 = vmatpush.msra.mxu0 %v29
    %294 = vmatmul.f32.gmra.mxu0 %v276
    %v295 = vpop.f32.mrf.mxu0
    %v296 = vadd.f32 0.0, %v295
    %297 = vdwg.mxu0
    %v298 = vadd.f32 %v114, %v296
    %v299 = vtanh.pop %v298
    %v300 = vmul.f32 %v299, %v160
    %v301 = vadd.f32 %v300, %v162
    %v302 = vmul.f32 %v301, %v266
    %304 = vrot.lane.b32.xlu0 %v301, 32
    %v305 = vpop.permute.xlu0 %304
    %v307 = vmul.f32 %v301, %v305
    %309 = vrot.lane.b32.xlu0 %v307, 32
    %v310 = vpop.permute.xlu0 %309
    %v312 = vadd.f32 %v302, %v310
    %v313 = vtanh.pop %v312
    %315 = vrot.lane.b32.xlu0 %v313, 32
    %v316 = vpop.permute.xlu0 %315
    %v318 = vmul.f32 %v301, %v316
    %320 = vrot.lane.b32.xlu0 %v318, 64
    %v321 = vpop.permute.xlu0 %320
    %v322 = vsel %vm134, %v321, 0
    %324 = vmatpush.msra.mxu0 0.0
    %325 = vmatpush.msra.mxu0 0.0
    %326 = vmatpush.msra.mxu0 0.0
    %327 = vmatpush.msra.mxu0 0.0
    %328 = vmatpush.msra.mxu0 0.0
    %329 = vmatpush.msra.mxu0 0.0
    %330 = vmatpush.msra.mxu0 0.0
    %331 = vmatpush.msra.mxu0 0.0
    %332 = vmatpush.msra.mxu0 0.0
    %333 = vmatpush.msra.mxu0 0.0
    %334 = vmatpush.msra.mxu0 0.0
    %335 = vmatpush.msra.mxu0 0.0
    %336 = vmatpush.msra.mxu0 %v32
    %337 = vmatpush.msra.mxu0 %v31
    %338 = vmatpush.msra.mxu0 %v30
    %339 = vmatpush.msra.mxu0 %v29
    %340 = vmatmul.f32.gmra.mxu0 %v322
    %v341 = vpop.f32.mrf.mxu0
    %v342 = vadd.f32 0.0, %v341
    %343 = vdwg.mxu0
    %v344 = vadd.f32 %v117, %v342
    %v345 = vtanh.pop %v344
    %v346 = vmul.f32 %v345, %v160
    %v347 = vadd.f32 %v346, %v162
    %v348 = vmul.f32 %v347, %v312
    %350 = vrot.lane.b32.xlu0 %v347, 32
    %v351 = vpop.permute.xlu0 %350
    %v353 = vmul.f32 %v347, %v351
    %355 = vrot.lane.b32.xlu0 %v353, 32
    %v356 = vpop.permute.xlu0 %355
    %v358 = vadd.f32 %v348, %v356
    %v359 = vtanh.pop %v358
    %361 = vrot.lane.b32.xlu0 %v359, 32
    %v362 = vpop.permute.xlu0 %361
    %v364 = vmul.f32 %v347, %v362
    %366 = vrot.lane.b32.xlu0 %v364, 64
    %v367 = vpop.permute.xlu0 %366
    %v368 = vsel %vm134, %v367, 0
    %370 = vmatpush.msra.mxu0 0.0
    %371 = vmatpush.msra.mxu0 0.0
    %372 = vmatpush.msra.mxu0 0.0
    %373 = vmatpush.msra.mxu0 0.0
    %374 = vmatpush.msra.mxu0 0.0
    %375 = vmatpush.msra.mxu0 0.0
    %376 = vmatpush.msra.mxu0 0.0
    %377 = vmatpush.msra.mxu0 0.0
    %378 = vmatpush.msra.mxu0 0.0
    %379 = vmatpush.msra.mxu0 0.0
    %380 = vmatpush.msra.mxu0 0.0
    %381 = vmatpush.msra.mxu0 0.0
    %382 = vmatpush.msra.mxu0 %v32
    %383 = vmatpush.msra.mxu0 %v31
    %384 = vmatpush.msra.mxu0 %v30
    %385 = vmatpush.msra.mxu0 %v29
    %386 = vmatmul.f32.gmra.mxu0 %v368
    %v387 = vpop.f32.mrf.mxu0
    %v388 = vadd.f32 0.0, %v387
    %389 = vdwg.mxu0
    %v390 = vadd.f32 %v120, %v388
    %v391 = vtanh.pop %v390
    %v392 = vmul.f32 %v391, %v160
    %v393 = vadd.f32 %v392, %v162
    %v394 = vmul.f32 %v393, %v358
    %396 = vrot.lane.b32.xlu0 %v393, 32
    %v397 = vpop.permute.xlu0 %396
    %v399 = vmul.f32 %v393, %v397
    %401 = vrot.lane.b32.xlu0 %v399, 32
    %v402 = vpop.permute.xlu0 %401
    %v404 = vadd.f32 %v394, %v402
    %v405 = vtanh.pop %v404
    %407 = vrot.lane.b32.xlu0 %v405, 32
    %v408 = vpop.permute.xlu0 %407
    %v410 = vmul.f32 %v393, %v408
    %412 = vrot.lane.b32.xlu0 %v410, 64
    %v413 = vpop.permute.xlu0 %412
    %v414 = vsel %vm134, %v413, 0
    %416 = vmatpush.msra.mxu0 0.0
    %417 = vmatpush.msra.mxu0 0.0
    %418 = vmatpush.msra.mxu0 0.0
    %419 = vmatpush.msra.mxu0 0.0
    %420 = vmatpush.msra.mxu0 0.0
    %421 = vmatpush.msra.mxu0 0.0
    %422 = vmatpush.msra.mxu0 0.0
    %423 = vmatpush.msra.mxu0 0.0
    %424 = vmatpush.msra.mxu0 0.0
    %425 = vmatpush.msra.mxu0 0.0
    %426 = vmatpush.msra.mxu0 0.0
    %427 = vmatpush.msra.mxu0 0.0
    %428 = vmatpush.msra.mxu0 %v32
    %429 = vmatpush.msra.mxu0 %v31
    %430 = vmatpush.msra.mxu0 %v30
    %431 = vmatpush.msra.mxu0 %v29
    %432 = vmatmul.f32.gmra.mxu0 %v414
    %v433 = vpop.f32.mrf.mxu0
    %v434 = vadd.f32 0.0, %v433
    %435 = vdwg.mxu0
    %v436 = vadd.f32 %v123, %v434
    %v437 = vtanh.pop %v436
    %v438 = vmul.f32 %v437, %v160
    %v439 = vadd.f32 %v438, %v162
    %v440 = vmul.f32 %v439, %v404
    %442 = vrot.lane.b32.xlu0 %v439, 32
    %v443 = vpop.permute.xlu0 %442
    %v445 = vmul.f32 %v439, %v443
    %447 = vrot.lane.b32.xlu0 %v445, 32
    %v448 = vpop.permute.xlu0 %447
    %v450 = vadd.f32 %v440, %v448
    %v451 = vtanh.pop %v450
    %453 = vrot.lane.b32.xlu0 %v451, 32
    %v454 = vpop.permute.xlu0 %453
    %v456 = vmul.f32 %v439, %v454
    %458 = vrot.lane.b32.xlu0 %v456, 64
    %v459 = vpop.permute.xlu0 %458
    %v460 = vsel %vm134, %v459, 0
    %462 = vmatpush.msra.mxu0 0.0
    %463 = vmatpush.msra.mxu0 0.0
    %464 = vmatpush.msra.mxu0 0.0
    %465 = vmatpush.msra.mxu0 0.0
    %466 = vmatpush.msra.mxu0 0.0
    %467 = vmatpush.msra.mxu0 0.0
    %468 = vmatpush.msra.mxu0 0.0
    %469 = vmatpush.msra.mxu0 0.0
    %470 = vmatpush.msra.mxu0 0.0
    %471 = vmatpush.msra.mxu0 0.0
    %472 = vmatpush.msra.mxu0 0.0
    %473 = vmatpush.msra.mxu0 0.0
    %474 = vmatpush.msra.mxu0 %v32
    %475 = vmatpush.msra.mxu0 %v31
    %476 = vmatpush.msra.mxu0 %v30
    %477 = vmatpush.msra.mxu0 %v29
    %478 = vmatmul.f32.gmra.mxu0 %v460
    %v479 = vpop.f32.mrf.mxu0
    %v480 = vadd.f32 0.0, %v479
    %481 = vdwg.mxu0
    %v482 = vadd.f32 %v126, %v480
    %v483 = vtanh.pop %v482
    %v484 = vmul.f32 %v483, %v160
    %v485 = vadd.f32 %v484, %v162
    %v486 = vmul.f32 %v485, %v450
    %488 = vrot.lane.b32.xlu0 %v485, 32
    %v489 = vpop.permute.xlu0 %488
    %v491 = vmul.f32 %v485, %v489
    %493 = vrot.lane.b32.xlu0 %v491, 32
    %v494 = vpop.permute.xlu0 %493
    %v496 = vadd.f32 %v486, %v494
    %v497 = vtanh.pop %v496
    %499 = vrot.lane.b32.xlu0 %v497, 32
    %v500 = vpop.permute.xlu0 %499
    %v502 = vmul.f32 %v485, %v500
    %504 = vrot.lane.b32.xlu0 %v502, 64
    %v505 = vpop.permute.xlu0 %504
    %v506 = vsel %vm134, %v505, 0
    %508 = vmatpush.msra.mxu0 0.0
    %509 = vmatpush.msra.mxu0 0.0
    %510 = vmatpush.msra.mxu0 0.0
    %511 = vmatpush.msra.mxu0 0.0
    %512 = vmatpush.msra.mxu0 0.0
    %513 = vmatpush.msra.mxu0 0.0
    %514 = vmatpush.msra.mxu0 0.0
    %515 = vmatpush.msra.mxu0 0.0
    %516 = vmatpush.msra.mxu0 0.0
    %517 = vmatpush.msra.mxu0 0.0
    %518 = vmatpush.msra.mxu0 0.0
    %519 = vmatpush.msra.mxu0 0.0
    %520 = vmatpush.msra.mxu0 %v32
    %521 = vmatpush.msra.mxu0 %v31
    %522 = vmatpush.msra.mxu0 %v30
    %523 = vmatpush.msra.mxu0 %v29
    %524 = vmatmul.f32.gmra.mxu0 %v506
    %v525 = vpop.f32.mrf.mxu0
    %v526 = vadd.f32 0.0, %v525
    %527 = vdwg.mxu0
    %v528 = vadd.f32 %v129, %v526
    %v529 = vtanh.pop %v528
    %v530 = vmul.f32 %v529, %v160
    %v531 = vadd.f32 %v530, %v162
    %v532 = vmul.f32 %v531, %v496
    %534 = vrot.lane.b32.xlu0 %v531, 32
    %v535 = vpop.permute.xlu0 %534
    %v537 = vmul.f32 %v531, %v535
    %539 = vrot.lane.b32.xlu0 %v537, 32
    %v540 = vpop.permute.xlu0 %539
    %v542 = vadd.f32 %v532, %v540
    %v543 = vtanh.pop %v542
    %545 = vrot.lane.b32.xlu0 %v543, 32
    %v546 = vpop.permute.xlu0 %545
    %v548 = vmul.f32 %v531, %v546
    %550 = vrot.lane.b32.xlu0 %v548, 64
    %v551 = vpop.permute.xlu0 %550
    %v552 = vsel %vm134, %v551, 0
    %554 = vmatpush.msra.mxu0 0.0
    %555 = vmatpush.msra.mxu0 0.0
    %556 = vmatpush.msra.mxu0 0.0
    %557 = vmatpush.msra.mxu0 0.0
    %558 = vmatpush.msra.mxu0 0.0
    %559 = vmatpush.msra.mxu0 0.0
    %560 = vmatpush.msra.mxu0 0.0
    %561 = vmatpush.msra.mxu0 0.0
    %562 = vmatpush.msra.mxu0 0.0
    %563 = vmatpush.msra.mxu0 0.0
    %564 = vmatpush.msra.mxu0 0.0
    %565 = vmatpush.msra.mxu0 0.0
    %566 = vmatpush.msra.mxu0 %v32
    %567 = vmatpush.msra.mxu0 %v31
    %568 = vmatpush.msra.mxu0 %v30
    %569 = vmatpush.msra.mxu0 %v29
    %570 = vmatmul.f32.gmra.mxu0 %v552
    %v571 = vpop.f32.mrf.mxu0
    %v572 = vadd.f32 0.0, %v571
    %573 = vdwg.mxu0
    %v574 = vadd.f32 %v132, %v572
    %v575 = vtanh.pop %v574
    %v576 = vmul.f32 %v575, %v160
    %v577 = vadd.f32 %v576, %v162
    %v578 = vmul.f32 %v577, %v542
    %580 = vrot.lane.b32.xlu0 %v577, 32
    %v581 = vpop.permute.xlu0 %580
    %v583 = vmul.f32 %v577, %v581
    %585 = vrot.lane.b32.xlu0 %v583, 32
    %v586 = vpop.permute.xlu0 %585
    %v588 = vadd.f32 %v578, %v586
    %v589 = vtanh.pop %v588
    %591 = vrot.lane.b32.xlu0 %v589, 32
    %v592 = vpop.permute.xlu0 %591
    %v594 = vmul.f32 %v577, %v592
    %v595 = vperm.slane %v40, 0
    %597 = vrot.lane.b32.xlu0 %v594, 64
    %v598 = vpop.permute.xlu0 %597
    %v599 = vsel %vm134, %v598, 0
    %601 = vmatpush.msra.mxu0 0.0
    %602 = vmatpush.msra.mxu0 0.0
    %603 = vmatpush.msra.mxu0 0.0
    %604 = vmatpush.msra.mxu0 0.0
    %605 = vmatpush.msra.mxu0 0.0
    %606 = vmatpush.msra.mxu0 0.0
    %607 = vmatpush.msra.mxu0 0.0
    %608 = vmatpush.msra.mxu0 0.0
    %609 = vmatpush.msra.mxu0 0.0
    %610 = vmatpush.msra.mxu0 0.0
    %611 = vmatpush.msra.mxu0 0.0
    %612 = vmatpush.msra.mxu0 0.0
    %613 = vmatpush.msra.mxu0 %v39
    %614 = vmatpush.msra.mxu0 %v38
    %615 = vmatpush.msra.mxu0 %v37
    %616 = vmatpush.msra.mxu0 %v36
    %617 = vmatmul.f32.gmra.mxu0 %v599
    %v618 = vpop.f32.mrf.mxu0
    %v619 = vadd.f32 %v595, %v618
    %620 = vdwg.mxu0
    %621 = vst [vmem:[#allocation5] sm:$0xff] %v619
    %v623 = vsel %vm134, %v598, 0.0
    %s624 = scalar_lea.vmem [#allocation5], 8
    %625 = vst [vmem:[%s624] sm:$0xff] %v623
    %627 = vrot.lane.b32.xlu0 %v588, 96
    %v628 = vpop.permute.xlu0 %627
    %v630 = vsel %vm134, %v628, 0.0
    %s631 = scalar_lea.vmem [#allocation5], 16
    %632 = vst [vmem:[%s631] sm:$0xff] %v630
    // Predicated region
    $region14: #{tpu_custom_call.1} parent=1 // pred_check
      _
    $region15: #{tpu_custom_call.1} parent=1 // pred_check_branch
      %634 = sbr.rel (0) target = $region17
    $region16: #{tpu_custom_call.1} parent=1 // pred_region
      %636 = vsyncadd [#allocation4], 0
      %s637 = sshll.u32 [#allocation5], 4
      %s638 = int_to_ptr.vmem [resolvable:$true] %s637
      %s639 = sshll.u32 %s2, 4
      %s640 = int_to_ptr.hbm [resolvable:$true] %s639
      %645 = dma.vmem_to_hbm [thread:$0]  %s638, 384, %s640, [#allocation4], 128, 128, 8
    $region17: #{tpu_custom_call.1} parent=1 // pred_fallthru
      _
    // Predicated region
    $region18: #{tpu_custom_call.1} parent=1 // pred_check
      _
    $region19: #{tpu_custom_call.1} parent=1 // pred_check_branch
      %647 = sbr.rel (0) target = $region21
    $region20: #{tpu_custom_call.1} parent=1 // pred_region
      %649 = dma.done [#allocation4], 384
    $region21: #{tpu_custom_call.1} parent=1 // pred_fallthru
      _
    %650 = vsyncpa [#allocation3], 1
    %651 = vsyncpa [#allocation4], 1

</llo_original>
